<compile_context>
chip_gen: v5e
topology: v5e:2x2
jax: 0.10.0
libtpu: 0.0.40
codegen_flags: <defaults>
</compile_context>

<pallas_src>
import functools
import math

import jax
import jax.numpy as jnp
from jax import lax
from jax.experimental import pallas as pl
from jax.experimental.pallas import tpu as pltpu


def _erf(x, *, approx_recip):
    # Abramowitz & Stegun 7.1.26 polynomial (|err| < 1.5e-7); only abs/recip/exp/mul/
    # add, which lower cleanly on the TPU VPU/EUP.
    p = 0.3275911
    a1, a2, a3, a4, a5 = (0.254829592, -0.284496736, 1.421413741,
                          -1.453152027, 1.061405429)
    ax = jnp.abs(x)
    denom = 1.0 + p * ax
    if approx_recip:
        # EUP reciprocal (production path): moves the divide off the VALU.  Done in
        # f32 so it lowers on every generation (v5e has no bf16 EUP).
        t = pl.reciprocal(denom.astype(jnp.float32), approx=True).astype(denom.dtype)
    else:
        t = 1.0 / denom
    poly = ((((a5 * t + a4) * t + a3) * t + a2) * t + a1) * t
    y = 1.0 - poly * jnp.exp(-ax * ax)
    return jnp.where(x >= 0, y, -y)


def _gelu_exact(x, *, approx_recip):
    # nn.GELU() default = exact erf-based GELU.
    return 0.5 * x * (1.0 + _erf(x * (1.0 / math.sqrt(2.0)), approx_recip=approx_recip))


def _decoder_kernel(coef_ref,    # SMEM (nlayers-1,)        ReZero coefficients
                    xz_ref,      # VMEM (TB, dff)           hoisted z @ (Wz@W1), f32
                    const_ref,   # VMEM (TS, dff)           folded (pe+bz)@W1+b1 (resident)
                    wout_ref,    # VMEM (dff, nclasses)     outporj weight (resident)
                    bout_ref,    # VMEM (1, nclasses)       outporj bias (resident)
                    out_ref,     # VMEM (TB, TS, nclasses)
                    *, ew_dtype, approx_recip):
    TB, dff = xz_ref.shape
    TS = const_ref.shape[0]
    nclasses = out_ref.shape[-1]

    # Folded affine prefix: only the broadcast add remains in-kernel.
    x = (xz_ref[...][:, None, :].astype(jnp.float32)
         + const_ref[...][None, :, :].astype(jnp.float32))        # (TB, TS, dff)
    x = x.astype(ew_dtype)

    gelu = functools.partial(_gelu_exact, approx_recip=approx_recip)

    # DecoderFFN GELU.
    x = gelu(x)

    # ReZeroFFNBlocks: effective op is x + dropout(gelu(x) * coef); dropout is identity
    # at inference, and the block's Linear(dff,dff) output is dead in the reference.
    def rezero(i, x):
        return x + gelu(x) * coef_ref[i].astype(x.dtype)
    x = lax.fori_loop(0, coef_ref.shape[0], rezero, x, unroll=True)

    # outporj as one fat GEMM: M = TB*TS (instead of per-row M=S matmuls).
    x2 = x.reshape(TB * TS, dff).astype(wout_ref.dtype)
    logits = jnp.dot(x2, wout_ref[...], preferred_element_type=jnp.float32)
    logits = logits + bout_ref[...].astype(jnp.float32)
    out_ref[...] = logits.reshape(TB, TS, nclasses).astype(out_ref.dtype)


def fold_decoder_params(pe, params, *, compute_dtype=jnp.float32,
                        const_dtype=jnp.float32):
    """Affine-prefix fold.  Compute ONCE per parameter set and cache the result;
    (z @ Wz + bz + pe) @ W1 + b1  ==  z @ (Wz @ W1) + ((pe + bz) @ W1 + b1)."""
    wz, bz, w1, b1 = params["wz"], params["bz"], params["w1"], params["b1"]
    wzf = (wz @ w1).astype(compute_dtype)               # (d_latent, dff)  matmul operand
    const = ((pe + bz) @ w1 + b1).astype(const_dtype)   # (S, dff)         additive term
    return dict(
        wzf=wzf,
        const=const,
        wout=params["wout"].astype(compute_dtype),
        bout=params["bout"].astype(jnp.float32),
        coefs=params["coefs"].astype(jnp.float32),
    )


def _pick_tb(B, S, target_m):
    # Smallest divisor of B such that TB*S >= target_m (MXU M dimension), else B.
    for d in range(1, B + 1):
        if B % d == 0 and d * S >= target_m:
            return d
    return B


def decoder_forward(z, folded, *, elementwise_dtype=jnp.float32,
                    out_dtype=jnp.float32, approx_recip=True,
                    target_m=256, ts=None):
    """Pallas forward from folded params.

    Production config (v6e/v7x): fold with compute_dtype=const_dtype=bfloat16,
    elementwise_dtype=bfloat16, out_dtype=bfloat16, approx_recip=True.
    On v5e keep elementwise_dtype=float32 (no bf16 VPU/EUP) and target_m=128.
    """
    B = z.shape[0]
    wzf, const = folded["wzf"], folded["const"]
    wout, bout, coefs = folded["wout"], folded["bout"], folded["coefs"]
    S, dff = const.shape
    nclasses = wout.shape[1]

    # Hoisted GEMM: one (B, d_latent) @ (d_latent, dff) instead of B M=1 matmuls
    # inside the kernel; also keeps Wzf out of resident VMEM.
    xz = jnp.dot(z.astype(wzf.dtype), wzf, preferred_element_type=jnp.float32)  # (B,dff) f32

    TB = _pick_tb(B, S, target_m)
    TS = S if ts is None else ts
    assert B % TB == 0 and S % TS == 0

    itemsize = lambda dt: jnp.dtype(dt).itemsize
    resident = 2 * (TB * dff * 4
                    + TS * dff * itemsize(const.dtype)
                    + dff * nclasses * itemsize(wout.dtype)
                    + nclasses * 4
                    + TB * TS * nclasses * itemsize(out_dtype))
    scratch = 4 * TB * TS * dff * 4
    vmem_limit = int(min(100 << 20, max(32 << 20, int(1.5 * (resident + scratch)))))

    kernel = functools.partial(_decoder_kernel, ew_dtype=elementwise_dtype,
                               approx_recip=approx_recip)

    return pl.pallas_call(
        kernel,
        out_shape=jax.ShapeDtypeStruct((B, S, nclasses), out_dtype),
        grid=(B // TB, S // TS),
        in_specs=[
            pl.BlockSpec(memory_space=pltpu.MemorySpace.SMEM),        # coefs (scalars)
            pl.BlockSpec((TB, dff), lambda b, s: (b, 0)),             # xz rows
            pl.BlockSpec((TS, dff), lambda b, s: (s, 0)),             # const (resident)
            # (v7x, production sizes: add pipeline_mode=pl.Buffered(1) to the two
            #  constant-index specs below to drop the redundant double buffer.)
            pl.BlockSpec((dff, nclasses), lambda b, s: (0, 0)),       # Wout  (resident)
            pl.BlockSpec((1, nclasses), lambda b, s: (0, 0)),         # bout  (resident)
        ],
        out_specs=pl.BlockSpec((TB, TS, nclasses), lambda b, s: (b, s, 0)),
        compiler_params=pltpu.CompilerParams(
            dimension_semantics=("parallel", "parallel"),
            vmem_limit_bytes=vmem_limit,
        ),
    )(coefs, xz, const, wout, bout)


def init_params(key, d_latent, d_model, dff, nlayers, nbits):
    nclasses = 2 ** nbits
    ks = jax.random.split(key, 3)

    def linear(k, din, dout):
        kw, kb = jax.random.split(k)
        bound = 1.0 / math.sqrt(din)
        w = jax.random.uniform(kw, (din, dout), jnp.float32, -bound, bound)
        b = jax.random.uniform(kb, (1, dout), jnp.float32, -bound, bound)
        return w, b

    wz, bz = linear(ks[0], d_latent, d_model)          # zproj
    w1, b1 = linear(ks[1], d_model, dff)               # ffn[0]
    wout, bout = linear(ks[2], dff, nclasses)          # outporj
    # PyTorch inits coef = 0 (ReZero blocks start as identity); nonzero here only so
    # the test exercises the ReZero path.  Do not ship as a default.
    coefs = 0.1 * jnp.arange(1, nlayers, dtype=jnp.float32)
    # NOTE: each ReZeroFFNBlock also owns a Linear(dff, dff) whose output is dead in
    # the reference forward, so its weights never affect the result — omitted.
    return dict(wz=wz, bz=bz, w1=w1, b1=b1, wout=wout, bout=bout, coefs=coefs)


def decoder_reference(z, pe, params):
    # Pure-JAX f32 reference mirroring the (unfolded) PyTorch forward, inference mode.
    h = z @ params["wz"] + params["bz"]
    x = h[:, None, :] + pe[None, :, :]
    x = x @ params["w1"] + params["b1"]
    x = jax.nn.gelu(x, approximate=False)
    for c in params["coefs"]:
        x = x + jax.nn.gelu(x, approximate=False) * c
    return x @ params["wout"] + params["bout"]


# TODO(synk): training-mode dropout (random mask + scaling) is not implemented; the
# kernel covers inference where nn.Dropout is the identity.

if __name__ == "__main__":
    B, S = 2, 8
    d_latent, d_model, dff, nlayers, nbits = 16, 32, 64, 3, 8

    key = jax.random.PRNGKey(0)
    kz, kpe, kp = jax.random.split(key, 3)
    z = jax.random.normal(kz, (B, d_latent), jnp.float32)
    pe = jax.random.normal(kpe, (S, d_model), jnp.float32)
    params = init_params(kp, d_latent, d_model, dff, nlayers, nbits)

    ref = decoder_reference(z, pe, params)

    # f32 path (exact divide in erf): tight agreement with the f32 reference.
    folded_f32 = fold_decoder_params(pe, params)
    out = jax.block_until_ready(decoder_forward(z, folded_f32, approx_recip=False))
    assert out.shape == (B, S, 2 ** nbits), out.shape
    max_err = float(jnp.max(jnp.abs(out - ref)))
    assert jnp.allclose(out, ref, atol=2e-3, rtol=2e-3), max_err

    # Production path (v6e/v7x): bf16 matmul operands, bf16 elementwise GELU/ReZero
    # chain, bf16 const, bf16 logits, EUP approx reciprocal.  f32 accumulation on MXU.
    folded_bf16 = fold_decoder_params(pe, params, compute_dtype=jnp.bfloat16,
                                      const_dtype=jnp.bfloat16)
    out_prod = jax.block_until_ready(
        decoder_forward(z, folded_bf16, elementwise_dtype=jnp.bfloat16,
                        out_dtype=jnp.bfloat16, approx_recip=True))
    max_err_prod = float(jnp.max(jnp.abs(out_prod.astype(jnp.float32) - ref)))
    assert jnp.allclose(out_prod.astype(jnp.float32), ref, atol=2e-1, rtol=2e-1), max_err_prod

    print("KERNEL_OK")
</pallas_src>

<mosaic_0001>
module attributes {stable_mosaic.version = 11 : i64} {
  func.func @_decoder_kernel(%arg0: i32, %arg1: i32, %arg2: memref<2xf32, #tpu.memory_space<smem>>, %arg3: memref<2x64xf32, #tpu.memory_space<vmem>>, %arg4: memref<8x64xf32, #tpu.memory_space<vmem>>, %arg5: memref<64x256xf32, #tpu.memory_space<vmem>>, %arg6: memref<1x256xf32, #tpu.memory_space<vmem>>, %arg7: memref<2x8x256xf32, #tpu.memory_space<vmem>>) attributes {dimension_semantics = [#tpu.dimension_semantics<parallel>, #tpu.dimension_semantics<parallel>], iteration_bounds = array<i64: 1, 1>, scalar_prefetch = 0 : i64, scratch_operands = 0 : i64, tpu.core_type = #tpu.core_type<tc>, window_params = [{transform_indices = @transform_0, window_bounds = array<i64: 2>}, {transform_indices = @transform_1, window_bounds = array<i64: 2, 64>}, {transform_indices = @transform_2, window_bounds = array<i64: 8, 64>}, {pipeline_mode = #tpu.pipeline_mode<synchronous>, transform_indices = @transform_3, window_bounds = array<i64: 64, 256>}, {pipeline_mode = #tpu.pipeline_mode<synchronous>, transform_indices = @transform_4, window_bounds = array<i64: 1, 256>}, {transform_indices = @transform_5, window_bounds = array<i64: 2, 8, 256>}]} {
    %c0 = arith.constant 0 : index
    %c0_0 = arith.constant 0 : index
    %0 = vector.load %arg3[%c0, %c0_0] : memref<2x64xf32, #tpu.memory_space<vmem>>, vector<2x64xf32>
    %1 = vector.shape_cast %0 : vector<2x64xf32> to vector<2x1x64xf32>
    %c0_1 = arith.constant 0 : index
    %c0_2 = arith.constant 0 : index
    %2 = vector.load %arg4[%c0_1, %c0_2] : memref<8x64xf32, #tpu.memory_space<vmem>>, vector<8x64xf32>
    %3 = vector.shape_cast %2 : vector<8x64xf32> to vector<1x8x64xf32>
    %4 = vector.broadcast %1 : vector<2x1x64xf32> to vector<2x8x64xf32>
    %5 = vector.broadcast %3 : vector<1x8x64xf32> to vector<2x8x64xf32>
    %6 = arith.addf %4, %5 : vector<2x8x64xf32>
    %cst = arith.constant 5.000000e-01 : f32
    %7 = vector.broadcast %cst : f32 to vector<2x8x64xf32>
    %8 = arith.mulf %7, %6 : vector<2x8x64xf32>
    %cst_3 = arith.constant 0.707106769 : f32
    %9 = vector.broadcast %cst_3 : f32 to vector<2x8x64xf32>
    %10 = arith.mulf %6, %9 : vector<2x8x64xf32>
    %11 = math.absf %10 : vector<2x8x64xf32>
    %cst_4 = arith.constant 0.327591091 : f32
    %12 = vector.broadcast %cst_4 : f32 to vector<2x8x64xf32>
    %13 = arith.mulf %12, %11 : vector<2x8x64xf32>
    %cst_5 = arith.constant 1.000000e+00 : f32
    %14 = vector.broadcast %cst_5 : f32 to vector<2x8x64xf32>
    %15 = arith.addf %14, %13 : vector<2x8x64xf32>
    %cst_6 = arith.constant 1.000000e+00 : f32
    %16 = vector.broadcast %cst_6 : f32 to vector<2x8x64xf32>
    %17 = arith.divf %16, %15 : vector<2x8x64xf32>
    %cst_7 = arith.constant 1.06140542 : f32
    %18 = vector.broadcast %cst_7 : f32 to vector<2x8x64xf32>
    %19 = arith.mulf %18, %17 : vector<2x8x64xf32>
    %cst_8 = arith.constant -1.45315206 : f32
    %20 = vector.broadcast %cst_8 : f32 to vector<2x8x64xf32>
    %21 = arith.addf %19, %20 : vector<2x8x64xf32>
    %22 = arith.mulf %21, %17 : vector<2x8x64xf32>
    %cst_9 = arith.constant 1.42141378 : f32
    %23 = vector.broadcast %cst_9 : f32 to vector<2x8x64xf32>
    %24 = arith.addf %22, %23 : vector<2x8x64xf32>
    %25 = arith.mulf %24, %17 : vector<2x8x64xf32>
    %cst_10 = arith.constant -0.284496725 : f32
    %26 = vector.broadcast %cst_10 : f32 to vector<2x8x64xf32>
    %27 = arith.addf %25, %26 : vector<2x8x64xf32>
    %28 = arith.mulf %27, %17 : vector<2x8x64xf32>
    %cst_11 = arith.constant 0.254829586 : f32
    %29 = vector.broadcast %cst_11 : f32 to vector<2x8x64xf32>
    %30 = arith.addf %28, %29 : vector<2x8x64xf32>
    %31 = arith.mulf %30, %17 : vector<2x8x64xf32>
    %cst_12 = arith.constant 0.000000e+00 : f32
    %32 = vector.broadcast %cst_12 : f32 to vector<2x8x64xf32>
    %33 = arith.subf %32, %11 : vector<2x8x64xf32>
    %34 = arith.mulf %33, %11 : vector<2x8x64xf32>
    %35 = math.exp %34 : vector<2x8x64xf32>
    %36 = arith.mulf %31, %35 : vector<2x8x64xf32>
    %cst_13 = arith.constant 1.000000e+00 : f32
    %37 = vector.broadcast %cst_13 : f32 to vector<2x8x64xf32>
    %38 = arith.subf %37, %36 : vector<2x8x64xf32>
    %cst_14 = arith.constant 0.000000e+00 : f32
    %39 = vector.broadcast %cst_14 : f32 to vector<2x8x64xf32>
    %40 = arith.cmpf oge, %10, %39 : vector<2x8x64xf32>
    %cst_15 = arith.constant 0.000000e+00 : f32
    %41 = vector.broadcast %cst_15 : f32 to vector<2x8x64xf32>
    %42 = arith.subf %41, %38 : vector<2x8x64xf32>
    %43 = arith.select %40, %38, %42 : vector<2x8x64xi1>, vector<2x8x64xf32>
    %cst_16 = arith.constant 1.000000e+00 : f32
    %44 = vector.broadcast %cst_16 : f32 to vector<2x8x64xf32>
    %45 = arith.addf %44, %43 : vector<2x8x64xf32>
    %46 = arith.mulf %8, %45 : vector<2x8x64xf32>
    %c0_i32 = arith.constant 0 : i32
    %cst_17 = arith.constant 5.000000e-01 : f32
    %47 = vector.broadcast %cst_17 : f32 to vector<2x8x64xf32>
    %48 = arith.mulf %47, %46 : vector<2x8x64xf32>
    %cst_18 = arith.constant 0.707106769 : f32
    %49 = vector.broadcast %cst_18 : f32 to vector<2x8x64xf32>
    %50 = arith.mulf %46, %49 : vector<2x8x64xf32>
    %51 = math.absf %50 : vector<2x8x64xf32>
    %cst_19 = arith.constant 0.327591091 : f32
    %52 = vector.broadcast %cst_19 : f32 to vector<2x8x64xf32>
    %53 = arith.mulf %52, %51 : vector<2x8x64xf32>
    %cst_20 = arith.constant 1.000000e+00 : f32
    %54 = vector.broadcast %cst_20 : f32 to vector<2x8x64xf32>
    %55 = arith.addf %54, %53 : vector<2x8x64xf32>
    %cst_21 = arith.constant 1.000000e+00 : f32
    %56 = vector.broadcast %cst_21 : f32 to vector<2x8x64xf32>
    %57 = arith.divf %56, %55 : vector<2x8x64xf32>
    %cst_22 = arith.constant 1.06140542 : f32
    %58 = vector.broadcast %cst_22 : f32 to vector<2x8x64xf32>
    %59 = arith.mulf %58, %57 : vector<2x8x64xf32>
    %cst_23 = arith.constant -1.45315206 : f32
    %60 = vector.broadcast %cst_23 : f32 to vector<2x8x64xf32>
    %61 = arith.addf %59, %60 : vector<2x8x64xf32>
    %62 = arith.mulf %61, %57 : vector<2x8x64xf32>
    %cst_24 = arith.constant 1.42141378 : f32
    %63 = vector.broadcast %cst_24 : f32 to vector<2x8x64xf32>
    %64 = arith.addf %62, %63 : vector<2x8x64xf32>
    %65 = arith.mulf %64, %57 : vector<2x8x64xf32>
    %cst_25 = arith.constant -0.284496725 : f32
    %66 = vector.broadcast %cst_25 : f32 to vector<2x8x64xf32>
    %67 = arith.addf %65, %66 : vector<2x8x64xf32>
    %68 = arith.mulf %67, %57 : vector<2x8x64xf32>
    %cst_26 = arith.constant 0.254829586 : f32
    %69 = vector.broadcast %cst_26 : f32 to vector<2x8x64xf32>
    %70 = arith.addf %68, %69 : vector<2x8x64xf32>
    %71 = arith.mulf %70, %57 : vector<2x8x64xf32>
    %cst_27 = arith.constant 0.000000e+00 : f32
    %72 = vector.broadcast %cst_27 : f32 to vector<2x8x64xf32>
    %73 = arith.subf %72, %51 : vector<2x8x64xf32>
    %74 = arith.mulf %73, %51 : vector<2x8x64xf32>
    %75 = math.exp %74 : vector<2x8x64xf32>
    %76 = arith.mulf %71, %75 : vector<2x8x64xf32>
    %cst_28 = arith.constant 1.000000e+00 : f32
    %77 = vector.broadcast %cst_28 : f32 to vector<2x8x64xf32>
    %78 = arith.subf %77, %76 : vector<2x8x64xf32>
    %cst_29 = arith.constant 0.000000e+00 : f32
    %79 = vector.broadcast %cst_29 : f32 to vector<2x8x64xf32>
    %80 = arith.cmpf oge, %50, %79 : vector<2x8x64xf32>
    %cst_30 = arith.constant 0.000000e+00 : f32
    %81 = vector.broadcast %cst_30 : f32 to vector<2x8x64xf32>
    %82 = arith.subf %81, %78 : vector<2x8x64xf32>
    %83 = arith.select %80, %78, %82 : vector<2x8x64xi1>, vector<2x8x64xf32>
    %cst_31 = arith.constant 1.000000e+00 : f32
    %84 = vector.broadcast %cst_31 : f32 to vector<2x8x64xf32>
    %85 = arith.addf %84, %83 : vector<2x8x64xf32>
    %86 = arith.mulf %48, %85 : vector<2x8x64xf32>
    %87 = arith.index_cast %c0_i32 : i32 to index
    %88 = memref.load %arg2[%87] : memref<2xf32, #tpu.memory_space<smem>>
    %89 = vector.broadcast %88 : f32 to vector<2x8x64xf32>
    %90 = arith.mulf %86, %89 : vector<2x8x64xf32>
    %91 = arith.addf %46, %90 : vector<2x8x64xf32>
    %c1_i32 = arith.constant 1 : i32
    %cst_32 = arith.constant 5.000000e-01 : f32
    %92 = vector.broadcast %cst_32 : f32 to vector<2x8x64xf32>
    %93 = arith.mulf %92, %91 : vector<2x8x64xf32>
    %cst_33 = arith.constant 0.707106769 : f32
    %94 = vector.broadcast %cst_33 : f32 to vector<2x8x64xf32>
    %95 = arith.mulf %91, %94 : vector<2x8x64xf32>
    %96 = math.absf %95 : vector<2x8x64xf32>
    %cst_34 = arith.constant 0.327591091 : f32
    %97 = vector.broadcast %cst_34 : f32 to vector<2x8x64xf32>
    %98 = arith.mulf %97, %96 : vector<2x8x64xf32>
    %cst_35 = arith.constant 1.000000e+00 : f32
    %99 = vector.broadcast %cst_35 : f32 to vector<2x8x64xf32>
    %100 = arith.addf %99, %98 : vector<2x8x64xf32>
    %cst_36 = arith.constant 1.000000e+00 : f32
    %101 = vector.broadcast %cst_36 : f32 to vector<2x8x64xf32>
    %102 = arith.divf %101, %100 : vector<2x8x64xf32>
    %cst_37 = arith.constant 1.06140542 : f32
    %103 = vector.broadcast %cst_37 : f32 to vector<2x8x64xf32>
    %104 = arith.mulf %103, %102 : vector<2x8x64xf32>
    %cst_38 = arith.constant -1.45315206 : f32
    %105 = vector.broadcast %cst_38 : f32 to vector<2x8x64xf32>
    %106 = arith.addf %104, %105 : vector<2x8x64xf32>
    %107 = arith.mulf %106, %102 : vector<2x8x64xf32>
    %cst_39 = arith.constant 1.42141378 : f32
    %108 = vector.broadcast %cst_39 : f32 to vector<2x8x64xf32>
    %109 = arith.addf %107, %108 : vector<2x8x64xf32>
    %110 = arith.mulf %109, %102 : vector<2x8x64xf32>
    %cst_40 = arith.constant -0.284496725 : f32
    %111 = vector.broadcast %cst_40 : f32 to vector<2x8x64xf32>
    %112 = arith.addf %110, %111 : vector<2x8x64xf32>
    %113 = arith.mulf %112, %102 : vector<2x8x64xf32>
    %cst_41 = arith.constant 0.254829586 : f32
    %114 = vector.broadcast %cst_41 : f32 to vector<2x8x64xf32>
    %115 = arith.addf %113, %114 : vector<2x8x64xf32>
    %116 = arith.mulf %115, %102 : vector<2x8x64xf32>
    %cst_42 = arith.constant 0.000000e+00 : f32
    %117 = vector.broadcast %cst_42 : f32 to vector<2x8x64xf32>
    %118 = arith.subf %117, %96 : vector<2x8x64xf32>
    %119 = arith.mulf %118, %96 : vector<2x8x64xf32>
    %120 = math.exp %119 : vector<2x8x64xf32>
    %121 = arith.mulf %116, %120 : vector<2x8x64xf32>
    %cst_43 = arith.constant 1.000000e+00 : f32
    %122 = vector.broadcast %cst_43 : f32 to vector<2x8x64xf32>
    %123 = arith.subf %122, %121 : vector<2x8x64xf32>
    %cst_44 = arith.constant 0.000000e+00 : f32
    %124 = vector.broadcast %cst_44 : f32 to vector<2x8x64xf32>
    %125 = arith.cmpf oge, %95, %124 : vector<2x8x64xf32>
    %cst_45 = arith.constant 0.000000e+00 : f32
    %126 = vector.broadcast %cst_45 : f32 to vector<2x8x64xf32>
    %127 = arith.subf %126, %123 : vector<2x8x64xf32>
    %128 = arith.select %125, %123, %127 : vector<2x8x64xi1>, vector<2x8x64xf32>
    %cst_46 = arith.constant 1.000000e+00 : f32
    %129 = vector.broadcast %cst_46 : f32 to vector<2x8x64xf32>
    %130 = arith.addf %129, %128 : vector<2x8x64xf32>
    %131 = arith.mulf %93, %130 : vector<2x8x64xf32>
    %132 = arith.index_cast %c1_i32 : i32 to index
    %133 = memref.load %arg2[%132] : memref<2xf32, #tpu.memory_space<smem>>
    %134 = vector.broadcast %133 : f32 to vector<2x8x64xf32>
    %135 = arith.mulf %131, %134 : vector<2x8x64xf32>
    %136 = arith.addf %91, %135 : vector<2x8x64xf32>
    %c2_i32 = arith.constant 2 : i32
    %137 = vector.shape_cast %136 : vector<2x8x64xf32> to vector<16x64xf32>
    %c0_47 = arith.constant 0 : index
    %c0_48 = arith.constant 0 : index
    %138 = vector.load %arg5[%c0_47, %c0_48] : memref<64x256xf32, #tpu.memory_space<vmem>>, vector<64x256xf32>
    %cst_49 = arith.constant dense<0.000000e+00> : vector<16x256xf32>
    %139 = tpu.matmul %137, %138, %cst_49 {dimension_numbers = #tpu.dot_dimension_numbers<[1], [0], [0], [1], [0, 0, 1, 1], [], []>} : vector<16x64xf32>, vector<64x256xf32>, vector<16x256xf32> -> vector<16x256xf32>
    %c0_50 = arith.constant 0 : index
    %c0_51 = arith.constant 0 : index
    %140 = vector.load %arg6[%c0_50, %c0_51] : memref<1x256xf32, #tpu.memory_space<vmem>>, vector<1x256xf32>
    %141 = vector.broadcast %140 : vector<1x256xf32> to vector<16x256xf32>
    %142 = arith.addf %139, %141 : vector<16x256xf32>
    %143 = vector.shape_cast %142 : vector<16x256xf32> to vector<2x8x256xf32>
    %c0_52 = arith.constant 0 : index
    %c0_53 = arith.constant 0 : index
    %c0_54 = arith.constant 0 : index
    %144 = vector.load %arg7[%c0_52, %c0_53, %c0_54] : memref<2x8x256xf32, #tpu.memory_space<vmem>>, vector<2x8x256xf32>
    tpu.vector_store %arg7[%c0_52, %c0_53, %c0_54], %143 {strides = array<i32>} : memref<2x8x256xf32, #tpu.memory_space<vmem>>, vector<2x8x256xf32>,
    return
  }
  func.func @transform_0(%arg0: i32, %arg1: i32) -> i32 {
    %c0_i32 = arith.constant 0 : i32
    %c0_i32_0 = arith.constant 0 : i32
    return %c0_i32 : i32
  }
  func.func @transform_1(%arg0: i32, %arg1: i32) -> (i32, i32) {
    %c0_i32 = arith.constant 0 : i32
    %c0_i32_0 = arith.constant 0 : i32
    return %arg0, %c0_i32 : i32, i32
  }
  func.func @transform_2(%arg0: i32, %arg1: i32) -> (i32, i32) {
    %c0_i32 = arith.constant 0 : i32
    %c0_i32_0 = arith.constant 0 : i32
    return %arg1, %c0_i32 : i32, i32
  }
  func.func @transform_3(%arg0: i32, %arg1: i32) -> (i32, i32) {
    %c0_i32 = arith.constant 0 : i32
    %c0_i32_0 = arith.constant 0 : i32
    %c0_i32_1 = arith.constant 0 : i32
    return %c0_i32, %c0_i32_0 : i32, i32
  }
  func.func @transform_4(%arg0: i32, %arg1: i32) -> (i32, i32) {
    %c0_i32 = arith.constant 0 : i32
    %c0_i32_0 = arith.constant 0 : i32
    %c0_i32_1 = arith.constant 0 : i32
    return %c0_i32, %c0_i32_0 : i32, i32
  }
  func.func @transform_5(%arg0: i32, %arg1: i32) -> (i32, i32, i32) {
    %c0_i32 = arith.constant 0 : i32
    %c0_i32_0 = arith.constant 0 : i32
    return %arg0, %arg1, %c0_i32 : i32, i32, i32
  }
}

</mosaic_0001>

<llo_original>
// kernel: tpu_custom_call.1
$region0: #{tpu_custom_call.1}
  #allocation0 [shape = 'u32[]', space=smem, size = 0x4, offset = 0x4, fixed_abs, tag = 'smem constant byte address 0x4 - core index']
  #allocation1 [shape = 'u32[72,128]{1,0:T(1,128)}', space=vmem, size = 0x9000, scoped, tag = 'internal scratch']
  %s0 = inlined_call_operand.hbm [shape: f32[2], index: 0, kind: input, shape index: {}]
  %s1 = inlined_call_operand.hbm [shape: f32[2,64], index: 1, kind: input, shape index: {}]
  %s2 = inlined_call_operand.hbm [shape: f32[8,64], index: 2, kind: input, shape index: {}]
  %s3 = inlined_call_operand.hbm [shape: f32[64,256], index: 3, kind: input, shape index: {}]
  %s4 = inlined_call_operand.vmem [shape: f32[1,256], index: 4, kind: input, shape index: {}]
  %s5 = inlined_call_operand.hbm [shape: f32[2,8,256], index: 5, kind: output, shape index: {}]
  %s6 = sld [smem:[#allocation0]]
  $region46: #{tpu_custom_call.1} parent=0
    _
  %s8 = ssub.s32 1, %s6
  %s9 = scalar_select 0, %s8, %s6
  $region1: #{tpu_custom_call.1} parent=0
    #allocation2 [shape = 'u8[512]{0}', space=smem, size = 0x200, scoped, tag = 'input window, operand 0, single buffered']
    #allocation3 [shape = 's32[1]{0}', space=sflag, size = 0x4, scoped, tag = 'scoped memory for tpu_custom_call.1']
    #allocation4 [shape = 's32[1]{0}', space=sflag, size = 0x4, scoped, tag = 'scoped memory for tpu_custom_call.1']
    #allocation5 [shape = 's32[1]{0}', space=sflag, size = 0x4, scoped, tag = 'scoped memory for tpu_custom_call.1']
    #allocation6 [shape = 'u8[1024]{0}', space=vmem, size = 0x400, scoped, tag = 'input window, operand 1, single buffered']
    #allocation7 [shape = 'u8[4096]{0}', space=vmem, size = 0x1000, scoped, tag = 'input window, operand 2, single buffered']
    #allocation8 [shape = 's32[1]{0}', space=sflag, size = 0x4, scoped, tag = 'scoped memory for tpu_custom_call.1']
    #allocation9 [shape = 'u8[65536]{0}', space=vmem, size = 0x10000, scoped, tag = 'input window, operand 3, single buffered']
    #allocation10 [shape = 'u8[16384]{0}', space=vmem, size = 0x4000, scoped, tag = 'output window, operand 0, single buffered']
    %10 = vsyncpa [#allocation5], 0
    %11 = vsyncpa [#allocation3], 0
    %12 = vsyncpa [#allocation8], 0
    %13 = vsyncpa [#allocation4], 0
    // Predicated region
    $region2: #{tpu_custom_call.1} parent=1 // pred_check
      _
    $region3: #{tpu_custom_call.1} parent=1 // pred_check_branch
      %15 = sbr.rel (0) target = $region5
    $region4: #{tpu_custom_call.1} parent=1 // pred_region
      %17 = vsyncadd [#allocation5], 0
      %s19 = sshll.u32 %s0, 4
      %s20 = int_to_ptr.hbm [resolvable:$true] %s19
      %22 = dma.hbm_to_smem %s20, 16, [#allocation2], [#allocation5]
    $region5: #{tpu_custom_call.1} parent=1 // pred_fallthru
      _
    // Predicated region
    $region6: #{tpu_custom_call.1} parent=1 // pred_check
      _
    $region7: #{tpu_custom_call.1} parent=1 // pred_check_branch
      %24 = sbr.rel (0) target = $region9
    $region8: #{tpu_custom_call.1} parent=1 // pred_region
      %26 = vsyncadd [#allocation3], 0
      %s28 = sshll.u32 %s1, 4
      %s29 = int_to_ptr.hbm [resolvable:$true] %s28
      %s30 = sshll.u32 [#allocation6], 4
      %s31 = int_to_ptr.vmem [resolvable:$true] %s30
      %33 = dma.hbm_to_vmem [thread:$0]  %s29, 32, %s31, [#allocation3]
    $region9: #{tpu_custom_call.1} parent=1 // pred_fallthru
      _
    // Predicated region
    $region10: #{tpu_custom_call.1} parent=1 // pred_check
      _
    $region11: #{tpu_custom_call.1} parent=1 // pred_check_branch
      %35 = sbr.rel (0) target = $region13
    $region12: #{tpu_custom_call.1} parent=1 // pred_region
      %37 = vsyncadd [#allocation8], 0
      %s39 = sshll.u32 %s2, 4
      %s40 = int_to_ptr.hbm [resolvable:$true] %s39
      %s41 = sshll.u32 [#allocation7], 4
      %s42 = int_to_ptr.vmem [resolvable:$true] %s41
      %44 = dma.hbm_to_vmem [thread:$0]  %s40, 128, %s42, [#allocation8]
    $region13: #{tpu_custom_call.1} parent=1 // pred_fallthru
      _
    // Predicated region
    $region14: #{tpu_custom_call.1} parent=1 // pred_check
      _
    $region15: #{tpu_custom_call.1} parent=1 // pred_check_branch
      %46 = sbr.rel (0) target = $region17
    $region16: #{tpu_custom_call.1} parent=1 // pred_region
      %48 = vsyncadd [#allocation8], 0
      %s49 = sshll.u32 %s3, 4
      %s50 = int_to_ptr.hbm [resolvable:$true] %s49
      %s51 = sshll.u32 [#allocation9], 4
      %s52 = int_to_ptr.vmem [resolvable:$true] %s51
      %57 = dma.hbm_to_vmem [thread:$0]  %s50, 2048, %s52, [#allocation8], 256, 256, 16
    $region17: #{tpu_custom_call.1} parent=1 // pred_fallthru
      _
    // Predicated region
    $region18: #{tpu_custom_call.1} parent=1 // pred_check
      _
    $region19: #{tpu_custom_call.1} parent=1 // pred_check_branch
      %59 = sbr.rel (0) target = $region21
    $region20: #{tpu_custom_call.1} parent=1 // pred_region
      _
    $region21: #{tpu_custom_call.1} parent=1 // pred_fallthru
      _
    // Predicated region
    $region22: #{tpu_custom_call.1} parent=1 // pred_check
      _
    $region23: #{tpu_custom_call.1} parent=1 // pred_check_branch
      %61 = sbr.rel (0) target = $region25
    $region24: #{tpu_custom_call.1} parent=1 // pred_region
      %63 = dma.done [#allocation5], 16
    $region25: #{tpu_custom_call.1} parent=1 // pred_fallthru
      _
    // Predicated region
    $region26: #{tpu_custom_call.1} parent=1 // pred_check
      _
    $region27: #{tpu_custom_call.1} parent=1 // pred_check_branch
      %65 = sbr.rel (0) target = $region29
    $region28: #{tpu_custom_call.1} parent=1 // pred_region
      %67 = dma.done [#allocation3], 32
    $region29: #{tpu_custom_call.1} parent=1 // pred_fallthru
      _
    // Predicated region
    $region30: #{tpu_custom_call.1} parent=1 // pred_check
      _
    $region31: #{tpu_custom_call.1} parent=1 // pred_check_branch
      %69 = sbr.rel (0) target = $region33
    $region32: #{tpu_custom_call.1} parent=1 // pred_region
      %71 = dma.done [#allocation8], 128
    $region33: #{tpu_custom_call.1} parent=1 // pred_fallthru
      _
    // Predicated region
    $region34: #{tpu_custom_call.1} parent=1 // pred_check
      _
    $region35: #{tpu_custom_call.1} parent=1 // pred_check_branch
      %73 = sbr.rel (0) target = $region37
    $region36: #{tpu_custom_call.1} parent=1 // pred_region
      %75 = dma.done [#allocation8], 2048
    $region37: #{tpu_custom_call.1} parent=1 // pred_fallthru
      _
    %76 = sfence
    %v77 = vld [vmem:[#allocation6] sm:$0x3]
    %v79 = vrot.slane %v77, 1
    %v80 = vld [vmem:[#allocation7] sm:$0xff]
    %v81 = vperm.slane %v77, 0
    %v82 = vperm.slane %v79, 0
    %v85 = vadd.f32 %v81, %v80
    %v86 = vadd.f32 %v82, %v80
    %v87 = vmul.f32 %v85, 0.5
    %v88 = vmul.f32 %v86, 0.5
    %v89 = vmul.f32 %v85, 0.70710677
    %v90 = vmul.f32 %v86, 0.70710677
    %v91 = vand.u32 2147483647, %v89
    %v92 = vand.u32 2147483647, %v90
    %v93 = vmul.f32 %v91, 0.3275911
    %v94 = vmul.f32 %v92, 0.3275911
    %v95 = vadd.f32 %v93, 1.0
    %v96 = vadd.f32 %v94, 1.0
    %v97 = vrcp.pop %v95
    %v98 = vmul.f32 %v95, %v97
    %v99 = vsub.f32 1.0, %v98
    %v100 = vmul.f32 %v97, %v99
    %v101 = vadd.f32 %v97, %v100
    %vm102 = vweird.f32 %v95
    %vm103 = vweird.f32 %v97
    %vm104 = vmor %vm102, %vm103
    %v105 = vsel %vm104, %v97, %v101
    %v106 = vand.u32 2147483647, %v95
    %vm107 = vcmp.eq.f32.partialorder %v106, 8.507059e+37
    %v108 = vand.u32 %v95, 2147483648
    %v109 = vor.u32 1.1754944e-38, %v108
    %v110 = vsel %vm107, %v109, %v105
    %v111 = vmul.f32 1.0, %v110
    %v112 = vrcp.pop %v96
    %v113 = vmul.f32 %v96, %v112
    %v114 = vsub.f32 1.0, %v113
    %v115 = vmul.f32 %v112, %v114
    %v116 = vadd.f32 %v112, %v115
    %vm117 = vweird.f32 %v96
    %vm118 = vweird.f32 %v112
    %vm119 = vmor %vm117, %vm118
    %v120 = vsel %vm119, %v112, %v116
    %v121 = vand.u32 2147483647, %v96
    %vm122 = vcmp.eq.f32.partialorder %v121, 8.507059e+37
    %v123 = vand.u32 %v96, 2147483648
    %v124 = vor.u32 1.1754944e-38, %v123
    %v125 = vsel %vm122, %v124, %v120
    %v126 = vmul.f32 1.0, %v125
    %v127 = vmul.f32 %v111, 1.0614054
    %v128 = vmul.f32 %v126, 1.0614054
    %v129 = vadd.f32 %v127, -1.4531521
    %v130 = vadd.f32 %v128, -1.4531521
    %v131 = vmul.f32 %v129, %v111
    %v132 = vmul.f32 %v130, %v126
    %v133 = vadd.f32 %v131, 1.4214138
    %v134 = vadd.f32 %v132, 1.4214138
    %v135 = vmul.f32 %v133, %v111
    %v136 = vmul.f32 %v134, %v126
    %v137 = vadd.f32 %v135, -0.28449672
    %v138 = vadd.f32 %v136, -0.28449672
    %v139 = vmul.f32 %v137, %v111
    %v140 = vmul.f32 %v138, %v126
    %v141 = vadd.f32 %v139, 0.2548296
    %v142 = vadd.f32 %v140, 0.2548296
    %v143 = vmul.f32 %v141, %v111
    %v144 = vmul.f32 %v142, %v126
    %v145 = vsub.f32 0.0, %v91
    %v146 = vsub.f32 0.0, %v92
    %v147 = vmul.f32 %v145, %v91
    %v148 = vmul.f32 %v146, %v92
    %v149 = vmul.f32 %v147, 1.442695
    %v150 = vpow.pop %v149
    %v151 = vmul.f32 %v148, 1.442695
    %v152 = vpow.pop %v151
    %v153 = vmul.f32 %v143, %v150
    %v154 = vmul.f32 %v144, %v152
    %v155 = vsub.f32 1.0, %v153
    %v156 = vsub.f32 1.0, %v154
    %vm157 = vcmp.ge.f32.partialorder %v89, 0.0
    %vm158 = vcmp.ge.f32.partialorder %v90, 0.0
    %v159 = vsub.f32 0.0, %v155
    %v160 = vsub.f32 0.0, %v156
    %v161 = vsel %vm157, %v155, %v159
    %v162 = vsel %vm158, %v156, %v160
    %v163 = vadd.f32 %v161, 1.0
    %v164 = vadd.f32 %v162, 1.0
    %v165 = vmul.f32 %v87, %v163
    %v166 = vmul.f32 %v88, %v164
    %v167 = vmul.f32 %v165, 0.5
    %v168 = vmul.f32 %v166, 0.5
    %v169 = vmul.f32 %v165, 0.70710677
    %v170 = vmul.f32 %v166, 0.70710677
    %v171 = vand.u32 2147483647, %v169
    %v172 = vand.u32 2147483647, %v170
    %v173 = vmul.f32 %v171, 0.3275911
    %v174 = vmul.f32 %v172, 0.3275911
    %v175 = vadd.f32 %v173, 1.0
    %v176 = vadd.f32 %v174, 1.0
    %v177 = vrcp.pop %v175
    %v178 = vmul.f32 %v175, %v177
    %v179 = vsub.f32 1.0, %v178
    %v180 = vmul.f32 %v177, %v179
    %v181 = vadd.f32 %v177, %v180
    %vm182 = vweird.f32 %v175
    %vm183 = vweird.f32 %v177
    %vm184 = vmor %vm182, %vm183
    %v185 = vsel %vm184, %v177, %v181
    %v186 = vand.u32 2147483647, %v175
    %vm187 = vcmp.eq.f32.partialorder %v186, 8.507059e+37
    %v188 = vand.u32 %v175, 2147483648
    %v189 = vor.u32 1.1754944e-38, %v188
    %v190 = vsel %vm187, %v189, %v185
    %v191 = vmul.f32 1.0, %v190
    %v192 = vrcp.pop %v176
    %v193 = vmul.f32 %v176, %v192
    %v194 = vsub.f32 1.0, %v193
    %v195 = vmul.f32 %v192, %v194
    %v196 = vadd.f32 %v192, %v195
    %vm197 = vweird.f32 %v176
    %vm198 = vweird.f32 %v192
    %vm199 = vmor %vm197, %vm198
    %v200 = vsel %vm199, %v192, %v196
    %v201 = vand.u32 2147483647, %v176
    %vm202 = vcmp.eq.f32.partialorder %v201, 8.507059e+37
    %v203 = vand.u32 %v176, 2147483648
    %v204 = vor.u32 1.1754944e-38, %v203
    %v205 = vsel %vm202, %v204, %v200
    %v206 = vmul.f32 1.0, %v205
    %v207 = vmul.f32 %v191, 1.0614054
    %v208 = vmul.f32 %v206, 1.0614054
    %v209 = vadd.f32 %v207, -1.4531521
    %v210 = vadd.f32 %v208, -1.4531521
    %v211 = vmul.f32 %v209, %v191
    %v212 = vmul.f32 %v210, %v206
    %v213 = vadd.f32 %v211, 1.4214138
    %v214 = vadd.f32 %v212, 1.4214138
    %v215 = vmul.f32 %v213, %v191
    %v216 = vmul.f32 %v214, %v206
    %v217 = vadd.f32 %v215, -0.28449672
    %v218 = vadd.f32 %v216, -0.28449672
    %v219 = vmul.f32 %v217, %v191
    %v220 = vmul.f32 %v218, %v206
    %v221 = vadd.f32 %v219, 0.2548296
    %v222 = vadd.f32 %v220, 0.2548296
    %v223 = vmul.f32 %v221, %v191
    %v224 = vmul.f32 %v222, %v206
    %v225 = vsub.f32 0.0, %v171
    %v226 = vsub.f32 0.0, %v172
    %v227 = vmul.f32 %v225, %v171
    %v228 = vmul.f32 %v226, %v172
    %v229 = vmul.f32 %v227, 1.442695
    %v230 = vpow.pop %v229
    %v231 = vmul.f32 %v228, 1.442695
    %v232 = vpow.pop %v231
    %v233 = vmul.f32 %v223, %v230
    %v234 = vmul.f32 %v224, %v232
    %v235 = vsub.f32 1.0, %v233
    %v236 = vsub.f32 1.0, %v234
    %vm237 = vcmp.ge.f32.partialorder %v169, 0.0
    %vm238 = vcmp.ge.f32.partialorder %v170, 0.0
    %v239 = vsub.f32 0.0, %v235
    %v240 = vsub.f32 0.0, %v236
    %v241 = vsel %vm237, %v235, %v239
    %v242 = vsel %vm238, %v236, %v240
    %v243 = vadd.f32 %v241, 1.0
    %v244 = vadd.f32 %v242, 1.0
    %v245 = vmul.f32 %v167, %v243
    %v246 = vmul.f32 %v168, %v244
    %s247 = sld [smem:[#allocation2]]
    %v248 = vstv %s247
    %v249 = vmul.f32 %v245, %v248
    %v250 = vmul.f32 %v246, %v248
    %v251 = vadd.f32 %v165, %v249
    %v252 = vadd.f32 %v166, %v250
    %v253 = vmul.f32 %v251, 0.5
    %v254 = vmul.f32 %v252, 0.5
    %v255 = vmul.f32 %v251, 0.70710677
    %v256 = vmul.f32 %v252, 0.70710677
    %v257 = vand.u32 2147483647, %v255
    %v258 = vand.u32 2147483647, %v256
    %v259 = vmul.f32 %v257, 0.3275911
    %v260 = vmul.f32 %v258, 0.3275911
    %v261 = vadd.f32 %v259, 1.0
    %v262 = vadd.f32 %v260, 1.0
    %v263 = vrcp.pop %v261
    %v264 = vmul.f32 %v261, %v263
    %v265 = vsub.f32 1.0, %v264
    %v266 = vmul.f32 %v263, %v265
    %v267 = vadd.f32 %v263, %v266
    %vm268 = vweird.f32 %v261
    %vm269 = vweird.f32 %v263
    %vm270 = vmor %vm268, %vm269
    %v271 = vsel %vm270, %v263, %v267
    %v272 = vand.u32 2147483647, %v261
    %vm273 = vcmp.eq.f32.partialorder %v272, 8.507059e+37
    %v274 = vand.u32 %v261, 2147483648
    %v275 = vor.u32 1.1754944e-38, %v274
    %v276 = vsel %vm273, %v275, %v271
    %v277 = vmul.f32 1.0, %v276
    %v278 = vrcp.pop %v262
    %v279 = vmul.f32 %v262, %v278
    %v280 = vsub.f32 1.0, %v279
    %v281 = vmul.f32 %v278, %v280
    %v282 = vadd.f32 %v278, %v281
    %vm283 = vweird.f32 %v262
    %vm284 = vweird.f32 %v278
    %vm285 = vmor %vm283, %vm284
    %v286 = vsel %vm285, %v278, %v282
    %v287 = vand.u32 2147483647, %v262
    %vm288 = vcmp.eq.f32.partialorder %v287, 8.507059e+37
    %v289 = vand.u32 %v262, 2147483648
    %v290 = vor.u32 1.1754944e-38, %v289
    %v291 = vsel %vm288, %v290, %v286
    %v292 = vmul.f32 1.0, %v291
    %v293 = vmul.f32 %v277, 1.0614054
    %v294 = vmul.f32 %v292, 1.0614054
    %v295 = vadd.f32 %v293, -1.4531521
    %v296 = vadd.f32 %v294, -1.4531521
    %v297 = vmul.f32 %v295, %v277
    %v298 = vmul.f32 %v296, %v292
    %v299 = vadd.f32 %v297, 1.4214138
    %v300 = vadd.f32 %v298, 1.4214138
    %v301 = vmul.f32 %v299, %v277
    %v302 = vmul.f32 %v300, %v292
    %v303 = vadd.f32 %v301, -0.28449672
    %v304 = vadd.f32 %v302, -0.28449672
    %v305 = vmul.f32 %v303, %v277
    %v306 = vmul.f32 %v304, %v292
    %v307 = vadd.f32 %v305, 0.2548296
    %v308 = vadd.f32 %v306, 0.2548296
    %v309 = vmul.f32 %v307, %v277
    %v310 = vmul.f32 %v308, %v292
    %v311 = vsub.f32 0.0, %v257
    %v312 = vsub.f32 0.0, %v258
    %v313 = vmul.f32 %v311, %v257
    %v314 = vmul.f32 %v312, %v258
    %v315 = vmul.f32 %v313, 1.442695
    %v316 = vpow.pop %v315
    %v317 = vmul.f32 %v314, 1.442695
    %v318 = vpow.pop %v317
    %v319 = vmul.f32 %v309, %v316
    %v320 = vmul.f32 %v310, %v318
    %v321 = vsub.f32 1.0, %v319
    %v322 = vsub.f32 1.0, %v320
    %vm323 = vcmp.ge.f32.partialorder %v255, 0.0
    %vm324 = vcmp.ge.f32.partialorder %v256, 0.0
    %v325 = vsub.f32 0.0, %v321
    %v326 = vsub.f32 0.0, %v322
    %v327 = vsel %vm323, %v321, %v325
    %v328 = vsel %vm324, %v322, %v326
    %v329 = vadd.f32 %v327, 1.0
    %v330 = vadd.f32 %v328, 1.0
    %v331 = vmul.f32 %v253, %v329
    %v332 = vmul.f32 %v254, %v330
    %s333 = sld [smem:[#allocation2 + $0x1]]
    %v334 = vstv %s333
    %v335 = vmul.f32 %v331, %v334
    %v336 = vmul.f32 %v332, %v334
    %v337 = vadd.f32 %v251, %v335
    %v338 = vadd.f32 %v252, %v336
    %v339 = vld [vmem:[#allocation9] sm:$0xff]
    %v340 = vld [vmem:[#allocation9 + $0x8] sm:$0xff]
    %v341 = vld [vmem:[#allocation9 + $0x10] sm:$0xff]
    %v342 = vld [vmem:[#allocation9 + $0x18] sm:$0xff]
    %v343 = vld [vmem:[#allocation9 + $0x20] sm:$0xff]
    %v344 = vld [vmem:[#allocation9 + $0x28] sm:$0xff]
    %v345 = vld [vmem:[#allocation9 + $0x30] sm:$0xff]
    %v346 = vld [vmem:[#allocation9 + $0x38] sm:$0xff]
    %v347 = vld [vmem:[#allocation9 + $0x40] sm:$0xff]
    %v348 = vld [vmem:[#allocation9 + $0x48] sm:$0xff]
    %v349 = vld [vmem:[#allocation9 + $0x50] sm:$0xff]
    %v350 = vld [vmem:[#allocation9 + $0x58] sm:$0xff]
    %v351 = vld [vmem:[#allocation9 + $0x60] sm:$0xff]
    %v352 = vld [vmem:[#allocation9 + $0x68] sm:$0xff]
    %v353 = vld [vmem:[#allocation9 + $0x70] sm:$0xff]
    %v354 = vld [vmem:[#allocation9 + $0x78] sm:$0xff]
    %v355 = vld [vmem:[%s4] sm:$0x3]
    %v357 = vperm.slane %v355, 0
    %v358 = vperm.slane %v355, 1
    %vm361 = vcmask 523264
    %v363 = vsel %vm361, %v337, 0
    %v366 = vsel %vm361, %v338, 0
    %368 = vmatpush.msra.mxu0 0.0
    %369 = vmatpush.msra.mxu0 0.0
    %370 = vmatpush.msra.mxu0 0.0
    %371 = vmatpush.msra.mxu0 0.0
    %372 = vmatpush.msra.mxu0 0.0
    %373 = vmatpush.msra.mxu0 0.0
    %374 = vmatpush.msra.mxu0 0.0
    %375 = vmatpush.msra.mxu0 0.0
    %376 = vmatpush.msra.mxu0 %v353
    %377 = vmatpush.msra.mxu0 %v351
    %378 = vmatpush.msra.mxu0 %v349
    %379 = vmatpush.msra.mxu0 %v347
    %380 = vmatpush.msra.mxu0 %v345
    %381 = vmatpush.msra.mxu0 %v343
    %382 = vmatpush.msra.mxu0 %v341
    %383 = vmatpush.msra.mxu0 %v339
    %384 = vmatmul.f32.gmra.mxu0 %v363
    %v385 = vpop.f32.mrf.mxu0
    %v386 = vadd.f32 %v357, %v385
    %387 = vmatmul.f32.gmra.mxu0 %v366
    %v388 = vpop.f32.mrf.mxu0
    %v389 = vadd.f32 %v357, %v388
    %390 = vdwg.mxu0
    %391 = vmatpush.msra.mxu0 0.0
    %392 = vmatpush.msra.mxu0 0.0
    %393 = vmatpush.msra.mxu0 0.0
    %394 = vmatpush.msra.mxu0 0.0
    %395 = vmatpush.msra.mxu0 0.0
    %396 = vmatpush.msra.mxu0 0.0
    %397 = vmatpush.msra.mxu0 0.0
    %398 = vmatpush.msra.mxu0 0.0
    %399 = vmatpush.msra.mxu0 %v354
    %400 = vmatpush.msra.mxu0 %v352
    %401 = vmatpush.msra.mxu0 %v350
    %402 = vmatpush.msra.mxu0 %v348
    %403 = vmatpush.msra.mxu0 %v346
    %404 = vmatpush.msra.mxu0 %v344
    %405 = vmatpush.msra.mxu0 %v342
    %406 = vmatpush.msra.mxu0 %v340
    %407 = vmatmul.f32.gmra.mxu0 %v363
    %v408 = vpop.f32.mrf.mxu0
    %v409 = vadd.f32 %v358, %v408
    %410 = vmatmul.f32.gmra.mxu0 %v366
    %v411 = vpop.f32.mrf.mxu0
    %v412 = vadd.f32 %v358, %v411
    %413 = vdwg.mxu0
    %414 = vst [vmem:[#allocation10] sm:$0xff] %v386
    %415 = vst [vmem:[#allocation10 + $0x8] sm:$0xff] %v409
    %416 = vst [vmem:[#allocation10 + $0x10] sm:$0xff] %v389
    %417 = vst [vmem:[#allocation10 + $0x18] sm:$0xff] %v412
    // Predicated region
    $region38: #{tpu_custom_call.1} parent=1 // pred_check
      _
    $region39: #{tpu_custom_call.1} parent=1 // pred_check_branch
      %419 = sbr.rel (0) target = $region41
    $region40: #{tpu_custom_call.1} parent=1 // pred_region
      %421 = vsyncadd [#allocation4], 0
      %s422 = sshll.u32 [#allocation10], 4
      %s423 = int_to_ptr.vmem [resolvable:$true] %s422
      %s424 = sshll.u32 %s5, 4
      %s425 = int_to_ptr.hbm [resolvable:$true] %s424
      %430 = dma.vmem_to_hbm [thread:$0]  %s423, 512, %s425, [#allocation4], 256, 256, 16
    $region41: #{tpu_custom_call.1} parent=1 // pred_fallthru
      _
    // Predicated region
    $region42: #{tpu_custom_call.1} parent=1 // pred_check
      _
    $region43: #{tpu_custom_call.1} parent=1 // pred_check_branch
      %432 = sbr.rel (0) target = $region45
    $region44: #{tpu_custom_call.1} parent=1 // pred_region
      %434 = dma.done [#allocation4], 512
    $region45: #{tpu_custom_call.1} parent=1 // pred_fallthru
      _
    %435 = vsyncpa [#allocation3], 1
    %436 = vsyncpa [#allocation8], 1
    %437 = vsyncpa [#allocation4], 1
    %438 = vsyncpa [#allocation5], 1

</llo_original>
